<compile_context>
chip_gen: v7x
topology: tpu7x:2x2x1
jax: 0.10.0
libtpu: 0.0.40
codegen_flags: <defaults>
</compile_context>

<pallas_src>
import functools
import math

import jax
import jax.numpy as jnp
from jax.experimental import pallas as pl
from jax.experimental.pallas import tpu as pltpu


def _round_up(x, m):
    return ((x + m - 1) // m) * m


# ----------------------------- Pallas kernel --------------------------------

def ptarl_kernel(x_ref, ew0_ref, ew1_ref, rws_ref, wc_ref, b_ref,
                 out_ref, *, dims):
    d0, d1, d_h, topic_num, out_dim = dims
    f32 = jnp.float32
    bf16 = jnp.bfloat16

    # Packed biases: one small load, rows sliced statically.
    b = b_ref[...]                       # (8, bpad) f32
    eb0 = b[0, :d0]
    eb1 = b[1, :d1]
    cb = b[5, :topic_num + out_dim]      # [red_b3 | red_b3 @ w_fused + head_b]

    x = x_ref[...]                       # (TB, d_in) bf16 (cast in wrapper)

    # --- encoder MLP: Linear -> ReLU (dropout is identity at inference) -----
    h = jnp.dot(x, ew0_ref[...], preferred_element_type=f32) + eb0
    h = jnp.maximum(h, 0.0)
    h = jnp.dot(h.astype(bf16), ew1_ref[...], preferred_element_type=f32) + eb1
    h = jnp.maximum(h, 0.0)
    enc = h                              # inputs_ returned by PTARL.forward

    # --- reduce head: (Linear -> GELU -> Dropout) x3 -------------------------
    r = h
    for k in range(3):                   # static unroll over stacked weights
        rb = b[2 + k, :d_h]
        r = jnp.dot(r.astype(bf16), rws_ref[k], preferred_element_type=f32) + rb
        r = jax.nn.gelu(r, approximate=True)          # tanh GELU -> EUP

    # --- single fused matmul producing [r_ | head_out] -----------------------
    # wc = [red_w3 | red_w3 @ (topic @ head_w)],  cb folds the head bias.
    ro = jnp.dot(r.astype(bf16), wc_ref[...], preferred_element_type=f32) + cb
    r_ = ro[:, :topic_num]
    out = ro[:, topic_num:topic_num + out_dim]

    # --- softmax(r_, dim=1): exact divide (topic_num tiny, nearly free) ------
    m = jnp.max(r_, axis=1, keepdims=True)
    e = jnp.exp(r_ - m)
    s = jnp.sum(e, axis=1, keepdims=True)
    soft = e / s

    # --- direct sliced stores; pad lanes stay untouched (sliced off later) ---
    out_ref[:, :out_dim] = out.astype(out_ref.dtype)
    out_ref[:, out_dim:out_dim + topic_num] = soft.astype(out_ref.dtype)
    out_ref[:, out_dim + topic_num:out_dim + topic_num + d_h] = \
        enc.astype(out_ref.dtype)


# ------------------------------- wrapper -------------------------------------

def _ptarl_forward_impl(x_num, x_cat, kp, *, topic_num, out_dim):
    """PTARL.forward for model_type ending in 'ot'.

    Returns (head_out, softmax(r_), inputs_, sigmoid(weight_)+0.01)."""
    # Glue: categorical embedding lookup + concat (same as PyTorch MLP).
    emb_rows = x_cat + kp["category_offsets"][None, :]            # (B, n_cat)
    emb = jnp.take(kp["cat_emb"], emb_rows, axis=0)               # (B, n_cat, d_emb)
    emb = emb.reshape(x_cat.shape[0], -1)
    # Cast the whole kernel input to bf16 up front (halves the input DMA).
    x = jnp.concatenate([x_num, emb], axis=-1).astype(jnp.bfloat16)  # (B, d_in)

    B, d_in = x.shape
    d0 = kp["enc_w0"].shape[1]
    d1 = kp["enc_w1"].shape[1]
    d_h = d1
    out_pad = 128                        # lane-dense bf16 output slab

    # Batch tiling: big tiles amortize per-grid-step overhead, but keep >= 2
    # grid steps whenever B allows so the "parallel" batch axis can be split
    # across both v7x TensorCores.  Multiples of 16 (bf16 sublane packing).
    tb = max(16, min(4096, _round_up(-(-B // 2), 16)))
    b_pad = _round_up(B, tb)
    if b_pad != B:
        x = jnp.pad(x, ((0, b_pad - B), (0, 0)))
    grid = (b_pad // tb,)

    kernel = functools.partial(
        ptarl_kernel, dims=(d0, d1, d_h, topic_num, out_dim))

    # Weights stay resident in VMEM across all grid steps (constant index_map).
    w_specs = [
        pl.BlockSpec(kp["enc_w0"].shape, lambda i: (0, 0)),
        pl.BlockSpec(kp["enc_w1"].shape, lambda i: (0, 0)),
        pl.BlockSpec(kp["red_w_stack"].shape, lambda i: (0, 0, 0)),
        pl.BlockSpec(kp["w_comb"].shape, lambda i: (0, 0)),
        pl.BlockSpec(kp["biases"].shape, lambda i: (0, 0)),
    ]

    weight_keys = ("enc_w0", "enc_w1", "red_w_stack", "w_comb", "biases")
    weight_bytes = sum(kp[k].size * kp[k].dtype.itemsize for k in weight_keys)
    # Double-buffered x + out blocks (bf16) + double-counted weights + margin.
    block_bytes = tb * d_in * 2 + tb * out_pad * 2
    vmem_budget = int(min(32 << 20,
                          max(8 << 20, 2 * block_bytes + 2 * weight_bytes + (2 << 20))))

    flops = 2 * b_pad * (d_in * d0 + d0 * d1 + 3 * d_h * d_h
                         + d_h * (topic_num + out_dim))
    trans = b_pad * (3 * d_h + topic_num)
    bytes_accessed = 2 * (b_pad * d_in + b_pad * out_pad) + weight_bytes

    slab = pl.pallas_call(
        kernel,
        out_shape=jax.ShapeDtypeStruct((b_pad, out_pad), jnp.bfloat16),
        grid_spec=pltpu.PrefetchScalarGridSpec(
            num_scalar_prefetch=0,
            grid=grid,
            in_specs=[pl.BlockSpec((tb, d_in), lambda i: (i, 0))] + w_specs,
            out_specs=pl.BlockSpec((tb, out_pad), lambda i: (i, 0)),
        ),
        compiler_params=pltpu.CompilerParams(
            dimension_semantics=("parallel",),
            vmem_limit_bytes=vmem_budget,
        ),
        cost_estimate=pl.CostEstimate(
            flops=int(flops), transcendentals=int(trans),
            bytes_accessed=int(bytes_accessed)),
    )(x, kp["enc_w0"], kp["enc_w1"], kp["red_w_stack"], kp["w_comb"],
      kp["biases"])

    head_out = slab[:B, :out_dim].astype(jnp.float32)
    soft_r = slab[:B, out_dim:out_dim + topic_num].astype(jnp.float32)
    inputs_ = slab[:B, out_dim + topic_num:
                   out_dim + topic_num + d_h].astype(jnp.float32)
    weight_gate = jax.nn.sigmoid(kp["weight_"]) + 0.01               # scalar glue
    return head_out, soft_r, inputs_, weight_gate


ptarl_forward = jax.jit(_ptarl_forward_impl,
                        static_argnames=("topic_num", "out_dim"))


# --------------------------- parameter construction --------------------------

def make_params(key, *, input_num, categories, d_embedding, d_layers,
                topic_num, out_dim):
    keys = jax.random.split(key, 16)
    ki = iter(keys)
    d_in = input_num + len(categories) * d_embedding
    d_h = d_layers[-1]

    def linear(k, fan_in, fan_out):
        # Deterministic Kaiming-uniform-like init; stored as (in, out).
        bound = 1.0 / math.sqrt(fan_in)
        k1, k2 = jax.random.split(k)
        w = jax.random.uniform(k1, (fan_in, fan_out), jnp.float32, -bound, bound)
        b = jax.random.uniform(k2, (fan_out,), jnp.float32, -bound, bound)
        return w, b

    p = {}
    p["cat_emb"] = jax.random.uniform(
        next(ki), (sum(categories), d_embedding), jnp.float32, -0.5, 0.5)
    offs = [0]
    for c in categories[:-1]:
        offs.append(offs[-1] + c)
    p["category_offsets"] = jnp.array(offs, dtype=jnp.int32)

    p["enc_w0"], p["enc_b0"] = linear(next(ki), d_in, d_layers[0])
    p["enc_w1"], p["enc_b1"] = linear(next(ki), d_layers[0], d_layers[1])
    p["red_w0"], p["red_b0"] = linear(next(ki), d_h, d_h)
    p["red_w1"], p["red_b1"] = linear(next(ki), d_h, d_h)
    p["red_w2"], p["red_b2"] = linear(next(ki), d_h, d_h)
    p["red_w3"], p["red_b3"] = linear(next(ki), d_h, topic_num)
    p["head_w"], p["head_b"] = linear(next(ki), d_h, out_dim)
    # cluster_centers_ -> topic parameter: (topic_num, d_hidden)
    p["topic"] = jax.random.normal(next(ki), (topic_num, d_h), jnp.float32)
    p["weight_"] = jnp.float32(0.5)
    return p


def pack_for_kernel(params):
    """One-time packing: fuse topic@head_w AND red_w3 into a single combined
    weight (producing [r_ | head_out] in one matmul), stack reduce weights,
    pack biases, cast matmul operands to bf16 (fp32 MXU accumulation)."""
    bf16 = jnp.bfloat16
    d_h = params["enc_w1"].shape[1]

    # head(r_ @ topic) == r_ @ (topic @ head_w) + head_b  (algebraic fusion)
    w_fused = jnp.dot(params["topic"], params["head_w"],
                      preferred_element_type=jnp.float32)          # (topic, out)
    # One matmul from the post-GELU activation:  pre @ [red_w3 | red_w3@w_fused]
    w_comb = jnp.concatenate(
        [params["red_w3"],
         jnp.dot(params["red_w3"], w_fused, preferred_element_type=jnp.float32)],
        axis=1)                                                    # (d_h, topic+out)
    cb = jnp.concatenate(
        [params["red_b3"],
         jnp.dot(params["red_b3"], w_fused) + params["head_b"]])   # (topic+out,)

    bias_list = [params["enc_b0"], params["enc_b1"], params["red_b0"],
                 params["red_b1"], params["red_b2"], cb]
    bpad = _round_up(max(b.shape[-1] for b in bias_list), 128)
    rows = [jnp.pad(b.reshape(-1), (0, bpad - b.shape[-1])) for b in bias_list]
    while len(rows) < 8:
        rows.append(jnp.zeros((bpad,), jnp.float32))   # pad to 8 sublanes
    biases = jnp.stack(rows, axis=0).astype(jnp.float32)           # (8, 128)

    kp = {
        "enc_w0": params["enc_w0"].astype(bf16),
        "enc_w1": params["enc_w1"].astype(bf16),
        "red_w_stack": jnp.stack(
            [params["red_w0"], params["red_w1"], params["red_w2"]],
            axis=0).astype(bf16),
        "w_comb": w_comb.astype(bf16),
        "biases": biases,
        "cat_emb": params["cat_emb"],
        "category_offsets": params["category_offsets"],
        "weight_": params["weight_"],
    }
    return kp


# ------------------------- pure-JAX reference (exact) -------------------------

def ptarl_reference(x_num, x_cat, params):
    emb_rows = x_cat + params["category_offsets"][None, :]
    emb = jnp.take(params["cat_emb"], emb_rows, axis=0).reshape(x_cat.shape[0], -1)
    x = jnp.concatenate([x_num, emb], axis=-1).astype(jnp.float32)
    h = jax.nn.relu(x @ params["enc_w0"] + params["enc_b0"])
    h = jax.nn.relu(h @ params["enc_w1"] + params["enc_b1"])
    r = h
    for k in range(3):
        r = jax.nn.gelu(r @ params[f"red_w{k}"] + params[f"red_b{k}"],
                        approximate=False)
    r = r @ params["red_w3"] + params["red_b3"]
    hid = r @ params["topic"]
    out = hid @ params["head_w"] + params["head_b"]
    soft = jax.nn.softmax(r, axis=1)
    return out, soft, h, jax.nn.sigmoid(params["weight_"]) + 0.01


# ------------------------------------ main ------------------------------------

if __name__ == "__main__":
    key = jax.random.PRNGKey(0)
    B = 8
    input_num = 8          # numeric features
    categories = [3, 5]    # two categorical features
    d_embedding = 4
    d_layers = [32, 32]
    topic_num = 8          # n_clusters
    out_dim = 2

    kparam, kx, kc = jax.random.split(key, 3)
    params = make_params(
        kparam,
        input_num=input_num,
        categories=categories,
        d_embedding=d_embedding,
        d_layers=d_layers,
        topic_num=topic_num,
        out_dim=out_dim,
    )
    packed = pack_for_kernel(params)

    x_num = jax.random.normal(kx, (B, input_num), jnp.float32)
    x_cat = jnp.stack(
        [jax.random.randint(jax.random.fold_in(kc, i), (B,), 0, c)
         for i, c in enumerate(categories)],
        axis=1,
    ).astype(jnp.int32)

    head_out, soft_r, inputs_, weight_gate = ptarl_forward(
        x_num, x_cat, packed, topic_num=topic_num, out_dim=out_dim)
    jax.block_until_ready((head_out, soft_r, inputs_, weight_gate))

    assert head_out.shape == (B, out_dim)
    assert soft_r.shape == (B, topic_num)
    assert inputs_.shape == (B, d_layers[-1])

    # softmax rows sum to ~1 (exact divide in fp32; bf16 output rounding only)
    assert bool(jnp.all(jnp.abs(jnp.sum(soft_r, axis=1) - 1.0) < 2e-2))

    # loose check vs exact fp32 reference (bf16 operands + bf16 output slab,
    # tanh-GELU are deliberate precision trade-offs from the review)
    r_out, r_soft, r_enc, r_gate = ptarl_reference(x_num, x_cat, params)
    assert float(jnp.max(jnp.abs(head_out - r_out))) < 0.25
    assert float(jnp.max(jnp.abs(soft_r - r_soft))) < 0.05
    assert float(jnp.max(jnp.abs(inputs_ - r_enc))) < 0.1
    assert float(jnp.abs(weight_gate - r_gate)) < 1e-5

    print("KERNEL_OK")
</pallas_src>

<mosaic_0001>
module attributes {stable_mosaic.version = 11 : i64} {
  func.func @ptarl_kernel(%arg0: i32, %arg1: memref<16x16xbf16, #tpu.memory_space<vmem>>, %arg2: memref<16x32xbf16, #tpu.memory_space<vmem>>, %arg3: memref<32x32xbf16, #tpu.memory_space<vmem>>, %arg4: memref<3x32x32xbf16, #tpu.memory_space<vmem>>, %arg5: memref<32x10xbf16, #tpu.memory_space<vmem>>, %arg6: memref<8x128xf32, #tpu.memory_space<vmem>>, %arg7: memref<16x128xbf16, #tpu.memory_space<vmem>>) attributes {dimension_semantics = [#tpu.dimension_semantics<parallel>], iteration_bounds = array<i64: 1>, scalar_prefetch = 0 : i64, scratch_operands = 0 : i64, tpu.core_type = #tpu.core_type<tc>, window_params = [{transform_indices = @transform_0, window_bounds = array<i64: 16, 16>}, {pipeline_mode = #tpu.pipeline_mode<synchronous>, transform_indices = @transform_1, window_bounds = array<i64: 16, 32>}, {pipeline_mode = #tpu.pipeline_mode<synchronous>, transform_indices = @transform_2, window_bounds = array<i64: 32, 32>}, {pipeline_mode = #tpu.pipeline_mode<synchronous>, transform_indices = @transform_3, window_bounds = array<i64: 3, 32, 32>}, {pipeline_mode = #tpu.pipeline_mode<synchronous>, transform_indices = @transform_4, window_bounds = array<i64: 32, 10>}, {pipeline_mode = #tpu.pipeline_mode<synchronous>, transform_indices = @transform_5, window_bounds = array<i64: 8, 128>}, {transform_indices = @transform_6, window_bounds = array<i64: 16, 128>}]} {
    %c0 = arith.constant 0 : index
    %c0_0 = arith.constant 0 : index
    %0 = vector.load %arg6[%c0, %c0_0] : memref<8x128xf32, #tpu.memory_space<vmem>>, vector<8x128xf32>
    %1 = vector.extract_strided_slice %0 {offsets = [0, 0], sizes = [1, 32], strides = [1, 1]} : vector<8x128xf32> to vector<1x32xf32>
    %2 = vector.shape_cast %1 : vector<1x32xf32> to vector<32xf32>
    %3 = vector.extract_strided_slice %0 {offsets = [1, 0], sizes = [1, 32], strides = [1, 1]} : vector<8x128xf32> to vector<1x32xf32>
    %4 = vector.shape_cast %3 : vector<1x32xf32> to vector<32xf32>
    %5 = vector.extract_strided_slice %0 {offsets = [5, 0], sizes = [1, 10], strides = [1, 1]} : vector<8x128xf32> to vector<1x10xf32>
    %6 = vector.shape_cast %5 : vector<1x10xf32> to vector<10xf32>
    %c0_1 = arith.constant 0 : index
    %c0_2 = arith.constant 0 : index
    %7 = vector.load %arg1[%c0_1, %c0_2] : memref<16x16xbf16, #tpu.memory_space<vmem>>, vector<16x16xbf16>
    %c0_3 = arith.constant 0 : index
    %c0_4 = arith.constant 0 : index
    %8 = vector.load %arg2[%c0_3, %c0_4] : memref<16x32xbf16, #tpu.memory_space<vmem>>, vector<16x32xbf16>
    %cst = arith.constant dense<0.000000e+00> : vector<16x32xf32>
    %9 = tpu.matmul %7, %8, %cst {dimension_numbers = #tpu.dot_dimension_numbers<[1], [0], [0], [1], [0, 0, 1, 1], [], []>} : vector<16x16xbf16>, vector<16x32xbf16>, vector<16x32xf32> -> vector<16x32xf32>
    %10 = vector.shape_cast %2 : vector<32xf32> to vector<1x32xf32>
    %11 = vector.broadcast %10 : vector<1x32xf32> to vector<16x32xf32>
    %12 = arith.addf %9, %11 : vector<16x32xf32>
    %cst_5 = arith.constant 0.000000e+00 : f32
    %13 = vector.broadcast %cst_5 : f32 to vector<16x32xf32>
    %14 = arith.maximumf %12, %13 : vector<16x32xf32>
    %15 = arith.truncf %14 : vector<16x32xf32> to vector<16x32xbf16>
    %c0_6 = arith.constant 0 : index
    %c0_7 = arith.constant 0 : index
    %16 = vector.load %arg3[%c0_6, %c0_7] : memref<32x32xbf16, #tpu.memory_space<vmem>>, vector<32x32xbf16>
    %cst_8 = arith.constant dense<0.000000e+00> : vector<16x32xf32>
    %17 = tpu.matmul %15, %16, %cst_8 {dimension_numbers = #tpu.dot_dimension_numbers<[1], [0], [0], [1], [0, 0, 1, 1], [], []>} : vector<16x32xbf16>, vector<32x32xbf16>, vector<16x32xf32> -> vector<16x32xf32>
    %18 = vector.shape_cast %4 : vector<32xf32> to vector<1x32xf32>
    %19 = vector.broadcast %18 : vector<1x32xf32> to vector<16x32xf32>
    %20 = arith.addf %17, %19 : vector<16x32xf32>
    %cst_9 = arith.constant 0.000000e+00 : f32
    %21 = vector.broadcast %cst_9 : f32 to vector<16x32xf32>
    %22 = arith.maximumf %20, %21 : vector<16x32xf32>
    %23 = vector.extract_strided_slice %0 {offsets = [2, 0], sizes = [1, 32], strides = [1, 1]} : vector<8x128xf32> to vector<1x32xf32>
    %24 = vector.shape_cast %23 : vector<1x32xf32> to vector<32xf32>
    %25 = arith.truncf %22 : vector<16x32xf32> to vector<16x32xbf16>
    %c0_10 = arith.constant 0 : index
    %c0_11 = arith.constant 0 : index
    %c0_12 = arith.constant 0 : index
    %26 = vector.load %arg4[%c0_10, %c0_11, %c0_12] : memref<3x32x32xbf16, #tpu.memory_space<vmem>>, vector<1x32x32xbf16>
    %27 = vector.shape_cast %26 : vector<1x32x32xbf16> to vector<32x32xbf16>
    %cst_13 = arith.constant dense<0.000000e+00> : vector<16x32xf32>
    %28 = tpu.matmul %25, %27, %cst_13 {dimension_numbers = #tpu.dot_dimension_numbers<[1], [0], [0], [1], [0, 0, 1, 1], [], []>} : vector<16x32xbf16>, vector<32x32xbf16>, vector<16x32xf32> -> vector<16x32xf32>
    %29 = vector.shape_cast %24 : vector<32xf32> to vector<1x32xf32>
    %30 = vector.broadcast %29 : vector<1x32xf32> to vector<16x32xf32>
    %31 = arith.addf %28, %30 : vector<16x32xf32>
    %32 = arith.mulf %31, %31 : vector<16x32xf32>
    %33 = arith.mulf %31, %32 : vector<16x32xf32>
    %cst_14 = arith.constant 4.471500e-02 : f32
    %34 = vector.broadcast %cst_14 : f32 to vector<16x32xf32>
    %35 = arith.mulf %34, %33 : vector<16x32xf32>
    %36 = arith.addf %31, %35 : vector<16x32xf32>
    %cst_15 = arith.constant 0.797884583 : f32
    %37 = vector.broadcast %cst_15 : f32 to vector<16x32xf32>
    %38 = arith.mulf %37, %36 : vector<16x32xf32>
    %39 = math.tanh %38 : vector<16x32xf32>
    %cst_16 = arith.constant 1.000000e+00 : f32
    %40 = vector.broadcast %cst_16 : f32 to vector<16x32xf32>
    %41 = arith.addf %40, %39 : vector<16x32xf32>
    %cst_17 = arith.constant 5.000000e-01 : f32
    %42 = vector.broadcast %cst_17 : f32 to vector<16x32xf32>
    %43 = arith.mulf %42, %41 : vector<16x32xf32>
    %44 = arith.mulf %31, %43 : vector<16x32xf32>
    %45 = vector.extract_strided_slice %0 {offsets = [3, 0], sizes = [1, 32], strides = [1, 1]} : vector<8x128xf32> to vector<1x32xf32>
    %46 = vector.shape_cast %45 : vector<1x32xf32> to vector<32xf32>
    %47 = arith.truncf %44 : vector<16x32xf32> to vector<16x32xbf16>
    %c1 = arith.constant 1 : index
    %c0_18 = arith.constant 0 : index
    %c0_19 = arith.constant 0 : index
    %48 = vector.load %arg4[%c1, %c0_18, %c0_19] : memref<3x32x32xbf16, #tpu.memory_space<vmem>>, vector<1x32x32xbf16>
    %49 = vector.shape_cast %48 : vector<1x32x32xbf16> to vector<32x32xbf16>
    %cst_20 = arith.constant dense<0.000000e+00> : vector<16x32xf32>
    %50 = tpu.matmul %47, %49, %cst_20 {dimension_numbers = #tpu.dot_dimension_numbers<[1], [0], [0], [1], [0, 0, 1, 1], [], []>} : vector<16x32xbf16>, vector<32x32xbf16>, vector<16x32xf32> -> vector<16x32xf32>
    %51 = vector.shape_cast %46 : vector<32xf32> to vector<1x32xf32>
    %52 = vector.broadcast %51 : vector<1x32xf32> to vector<16x32xf32>
    %53 = arith.addf %50, %52 : vector<16x32xf32>
    %54 = arith.mulf %53, %53 : vector<16x32xf32>
    %55 = arith.mulf %53, %54 : vector<16x32xf32>
    %cst_21 = arith.constant 4.471500e-02 : f32
    %56 = vector.broadcast %cst_21 : f32 to vector<16x32xf32>
    %57 = arith.mulf %56, %55 : vector<16x32xf32>
    %58 = arith.addf %53, %57 : vector<16x32xf32>
    %cst_22 = arith.constant 0.797884583 : f32
    %59 = vector.broadcast %cst_22 : f32 to vector<16x32xf32>
    %60 = arith.mulf %59, %58 : vector<16x32xf32>
    %61 = math.tanh %60 : vector<16x32xf32>
    %cst_23 = arith.constant 1.000000e+00 : f32
    %62 = vector.broadcast %cst_23 : f32 to vector<16x32xf32>
    %63 = arith.addf %62, %61 : vector<16x32xf32>
    %cst_24 = arith.constant 5.000000e-01 : f32
    %64 = vector.broadcast %cst_24 : f32 to vector<16x32xf32>
    %65 = arith.mulf %64, %63 : vector<16x32xf32>
    %66 = arith.mulf %53, %65 : vector<16x32xf32>
    %67 = vector.extract_strided_slice %0 {offsets = [4, 0], sizes = [1, 32], strides = [1, 1]} : vector<8x128xf32> to vector<1x32xf32>
    %68 = vector.shape_cast %67 : vector<1x32xf32> to vector<32xf32>
    %69 = arith.truncf %66 : vector<16x32xf32> to vector<16x32xbf16>
    %c2 = arith.constant 2 : index
    %c0_25 = arith.constant 0 : index
    %c0_26 = arith.constant 0 : index
    %70 = vector.load %arg4[%c2, %c0_25, %c0_26] : memref<3x32x32xbf16, #tpu.memory_space<vmem>>, vector<1x32x32xbf16>
    %71 = vector.shape_cast %70 : vector<1x32x32xbf16> to vector<32x32xbf16>
    %cst_27 = arith.constant dense<0.000000e+00> : vector<16x32xf32>
    %72 = tpu.matmul %69, %71, %cst_27 {dimension_numbers = #tpu.dot_dimension_numbers<[1], [0], [0], [1], [0, 0, 1, 1], [], []>} : vector<16x32xbf16>, vector<32x32xbf16>, vector<16x32xf32> -> vector<16x32xf32>
    %73 = vector.shape_cast %68 : vector<32xf32> to vector<1x32xf32>
    %74 = vector.broadcast %73 : vector<1x32xf32> to vector<16x32xf32>
    %75 = arith.addf %72, %74 : vector<16x32xf32>
    %76 = arith.mulf %75, %75 : vector<16x32xf32>
    %77 = arith.mulf %75, %76 : vector<16x32xf32>
    %cst_28 = arith.constant 4.471500e-02 : f32
    %78 = vector.broadcast %cst_28 : f32 to vector<16x32xf32>
    %79 = arith.mulf %78, %77 : vector<16x32xf32>
    %80 = arith.addf %75, %79 : vector<16x32xf32>
    %cst_29 = arith.constant 0.797884583 : f32
    %81 = vector.broadcast %cst_29 : f32 to vector<16x32xf32>
    %82 = arith.mulf %81, %80 : vector<16x32xf32>
    %83 = math.tanh %82 : vector<16x32xf32>
    %cst_30 = arith.constant 1.000000e+00 : f32
    %84 = vector.broadcast %cst_30 : f32 to vector<16x32xf32>
    %85 = arith.addf %84, %83 : vector<16x32xf32>
    %cst_31 = arith.constant 5.000000e-01 : f32
    %86 = vector.broadcast %cst_31 : f32 to vector<16x32xf32>
    %87 = arith.mulf %86, %85 : vector<16x32xf32>
    %88 = arith.mulf %75, %87 : vector<16x32xf32>
    %89 = arith.truncf %88 : vector<16x32xf32> to vector<16x32xbf16>
    %c0_32 = arith.constant 0 : index
    %c0_33 = arith.constant 0 : index
    %90 = vector.load %arg5[%c0_32, %c0_33] : memref<32x10xbf16, #tpu.memory_space<vmem>>, vector<32x10xbf16>
    %cst_34 = arith.constant dense<0.000000e+00> : vector<16x10xf32>
    %91 = tpu.matmul %89, %90, %cst_34 {dimension_numbers = #tpu.dot_dimension_numbers<[1], [0], [0], [1], [0, 0, 1, 1], [], []>} : vector<16x32xbf16>, vector<32x10xbf16>, vector<16x10xf32> -> vector<16x10xf32>
    %92 = vector.shape_cast %6 : vector<10xf32> to vector<1x10xf32>
    %93 = vector.broadcast %92 : vector<1x10xf32> to vector<16x10xf32>
    %94 = arith.addf %91, %93 : vector<16x10xf32>
    %95 = vector.extract_strided_slice %94 {offsets = [0, 0], sizes = [16, 8], strides = [1, 1]} : vector<16x10xf32> to vector<16x8xf32>
    %96 = vector.extract_strided_slice %94 {offsets = [0, 8], sizes = [16, 2], strides = [1, 1]} : vector<16x10xf32> to vector<16x2xf32>
    %cst_35 = arith.constant dense<0xFF800000> : vector<16xf32>
    %97 = vector.multi_reduction <maximumf>, %95, %cst_35 [1] : vector<16x8xf32> to vector<16xf32>
    %98 = vector.shape_cast %97 : vector<16xf32> to vector<16x1xf32>
    %99 = vector.broadcast %98 : vector<16x1xf32> to vector<16x8xf32>
    %100 = arith.subf %95, %99 : vector<16x8xf32>
    %101 = math.exp %100 : vector<16x8xf32>
    %cst_36 = arith.constant dense<0.000000e+00> : vector<16xf32>
    %102 = vector.multi_reduction <add>, %101, %cst_36 [1] : vector<16x8xf32> to vector<16xf32>
    %103 = vector.shape_cast %102 : vector<16xf32> to vector<16x1xf32>
    %104 = vector.broadcast %103 : vector<16x1xf32> to vector<16x8xf32>
    %105 = arith.divf %101, %104 : vector<16x8xf32>
    %106 = arith.truncf %96 : vector<16x2xf32> to vector<16x2xbf16>
    %c0_37 = arith.constant 0 : index
    %c0_38 = arith.constant 0 : index
    %107 = vector.load %arg7[%c0_37, %c0_38] : memref<16x128xbf16, #tpu.memory_space<vmem>>, vector<16x2xbf16>
    tpu.vector_store %arg7[%c0_37, %c0_38], %106 {strides = array<i32>} : memref<16x128xbf16, #tpu.memory_space<vmem>>, vector<16x2xbf16>,
    %108 = arith.truncf %105 : vector<16x8xf32> to vector<16x8xbf16>
    %c0_39 = arith.constant 0 : index
    %c2_40 = arith.constant 2 : index
    %109 = vector.load %arg7[%c0_39, %c2_40] : memref<16x128xbf16, #tpu.memory_space<vmem>>, vector<16x8xbf16>
    tpu.vector_store %arg7[%c0_39, %c2_40], %108 {strides = array<i32>} : memref<16x128xbf16, #tpu.memory_space<vmem>>, vector<16x8xbf16>,
    %110 = arith.truncf %22 : vector<16x32xf32> to vector<16x32xbf16>
    %c0_41 = arith.constant 0 : index
    %c10 = arith.constant 10 : index
    %111 = vector.load %arg7[%c0_41, %c10] : memref<16x128xbf16, #tpu.memory_space<vmem>>, vector<16x32xbf16>
    tpu.vector_store %arg7[%c0_41, %c10], %110 {strides = array<i32>} : memref<16x128xbf16, #tpu.memory_space<vmem>>, vector<16x32xbf16>,
    return
  }
  func.func @transform_0(%arg0: i32) -> (i32, i32) {
    %c0_i32 = arith.constant 0 : i32
    %c0_i32_0 = arith.constant 0 : i32
    return %arg0, %c0_i32 : i32, i32
  }
  func.func @transform_1(%arg0: i32) -> (i32, i32) {
    %c0_i32 = arith.constant 0 : i32
    %c0_i32_0 = arith.constant 0 : i32
    %c0_i32_1 = arith.constant 0 : i32
    return %c0_i32, %c0_i32_0 : i32, i32
  }
  func.func @transform_2(%arg0: i32) -> (i32, i32) {
    %c0_i32 = arith.constant 0 : i32
    %c0_i32_0 = arith.constant 0 : i32
    %c0_i32_1 = arith.constant 0 : i32
    return %c0_i32, %c0_i32_0 : i32, i32
  }
  func.func @transform_3(%arg0: i32) -> (i32, i32, i32) {
    %c0_i32 = arith.constant 0 : i32
    %c0_i32_0 = arith.constant 0 : i32
    %c0_i32_1 = arith.constant 0 : i32
    %c0_i32_2 = arith.constant 0 : i32
    return %c0_i32, %c0_i32_0, %c0_i32_1 : i32, i32, i32
  }
  func.func @transform_4(%arg0: i32) -> (i32, i32) {
    %c0_i32 = arith.constant 0 : i32
    %c0_i32_0 = arith.constant 0 : i32
    %c0_i32_1 = arith.constant 0 : i32
    return %c0_i32, %c0_i32_0 : i32, i32
  }
  func.func @transform_5(%arg0: i32) -> (i32, i32) {
    %c0_i32 = arith.constant 0 : i32
    %c0_i32_0 = arith.constant 0 : i32
    %c0_i32_1 = arith.constant 0 : i32
    return %c0_i32, %c0_i32_0 : i32, i32
  }
  func.func @transform_6(%arg0: i32) -> (i32, i32) {
    %c0_i32 = arith.constant 0 : i32
    %c0_i32_0 = arith.constant 0 : i32
    return %arg0, %c0_i32 : i32, i32
  }
}

</mosaic_0001>

<llo_original>
// kernel: _ptarl_forward_impl.1
$region0: #{_ptarl_forward_impl.1}
  #allocation0 [shape = 'u32[]', space=smem, size = 0x4, offset = 0x4, fixed_abs, tag = 'smem constant byte address 0x4 - core index']
  #allocation1 [shape = 'u32[144,128]{1,0:T(1,128)}', space=vmem, size = 0x12000, scoped, tag = 'internal scratch']
  %s0 = inlined_call_operand.vmem [shape: bf16[16,16], index: 0, kind: input, shape index: {}]
  %s1 = inlined_call_operand.vmem [shape: bf16[16,32], index: 1, kind: input, shape index: {}]
  %s2 = inlined_call_operand.vmem [shape: bf16[32,32], index: 2, kind: input, shape index: {}]
  %s3 = inlined_call_operand.vmem [shape: bf16[3,32,32], index: 3, kind: input, shape index: {}]
  %s4 = inlined_call_operand.vmem [shape: bf16[32,10], index: 4, kind: input, shape index: {}]
  %s5 = inlined_call_operand.vmem [shape: f32[8,128], index: 5, kind: input, shape index: {}]
  %s6 = inlined_call_operand.vmem [shape: bf16[16,128], index: 6, kind: output, shape index: {}]
  %s7 = sld [smem:[#allocation0]]
  $region34: #{_ptarl_forward_impl.1} parent=0
    _
  %s9 = ssub.s32 1, %s7
  %s10 = scalar_select 0, %s9, %s7
  // Predicated region
  $region2: #{_ptarl_forward_impl.1} parent=0 // pred_check
    _
  $region3: #{_ptarl_forward_impl.1} parent=0 // pred_check_branch
    %12 = sbr.rel (0) target = $region5
  $region4: #{_ptarl_forward_impl.1} parent=0 // pred_region
    _
  $region5: #{_ptarl_forward_impl.1} parent=0 // pred_fallthru
    _
  // Predicated region
  $region6: #{_ptarl_forward_impl.1} parent=0 // pred_check
    _
  $region7: #{_ptarl_forward_impl.1} parent=0 // pred_check_branch
    %14 = sbr.rel (0) target = $region9
  $region8: #{_ptarl_forward_impl.1} parent=0 // pred_region
    _
  $region9: #{_ptarl_forward_impl.1} parent=0 // pred_fallthru
    _
  // Predicated region
  $region10: #{_ptarl_forward_impl.1} parent=0 // pred_check
    _
  $region11: #{_ptarl_forward_impl.1} parent=0 // pred_check_branch
    %16 = sbr.rel (0) target = $region13
  $region12: #{_ptarl_forward_impl.1} parent=0 // pred_region
    _
  $region13: #{_ptarl_forward_impl.1} parent=0 // pred_fallthru
    _
  // Predicated region
  $region14: #{_ptarl_forward_impl.1} parent=0 // pred_check
    _
  $region15: #{_ptarl_forward_impl.1} parent=0 // pred_check_branch
    %18 = sbr.rel (0) target = $region17
  $region16: #{_ptarl_forward_impl.1} parent=0 // pred_region
    _
  $region17: #{_ptarl_forward_impl.1} parent=0 // pred_fallthru
    _
  // Predicated region
  $region18: #{_ptarl_forward_impl.1} parent=0 // pred_check
    _
  $region19: #{_ptarl_forward_impl.1} parent=0 // pred_check_branch
    %20 = sbr.rel (0) target = $region21
  $region20: #{_ptarl_forward_impl.1} parent=0 // pred_region
    _
  $region21: #{_ptarl_forward_impl.1} parent=0 // pred_fallthru
    _
  // Predicated region
  $region22: #{_ptarl_forward_impl.1} parent=0 // pred_check
    _
  $region23: #{_ptarl_forward_impl.1} parent=0 // pred_check_branch
    %22 = sbr.rel (0) target = $region25
  $region24: #{_ptarl_forward_impl.1} parent=0 // pred_region
    _
  $region25: #{_ptarl_forward_impl.1} parent=0 // pred_fallthru
    _
  %v24 = vld [vmem:[%s5] sm:$0xff]
  %v25 = vld [vmem:[%s0] sm:$0xf]
  %v26 = vld [vmem:[%s0 + $0x4] sm:$0xf]
  %v27 = vld [vmem:[%s1] sm:$0xf]
  %v28 = vld [vmem:[%s1 + $0x4] sm:$0xf]
  %v29 = vlaneseq
  %v30 = vshrl.u32 %v29, 7
  %v31 = vsub.s32 0, %v30
  %v32 = vrot.slane %v24, %v31
  %v35 = vunpack.c.l.b16 %v25
  %v36 = vunpack.c.l.b16 %v26
  %v37 = vpack.c.b16 %v36, %v35
  %v40 = vunpack.c.l.b16 %v27
  %v41 = vunpack.c.l.b16 %v28
  %v42 = vpack.c.b16 %v41, %v40
  %vm44 = vcmask 130048
  %v46 = vsel %vm44, %v37, 0
  %48 = vmatprep.subr.bf16.mxu0 0
  %49 = vmatpush1.bf16.msra.mxu0 %v42
  %50 = vmatprep.subr.bf16.mxu0 0
  %51 = vmatpush1.bf16.msra.mxu0 0
  %52 = vmatprep.subr.bf16.mxu0 0
  %53 = vmatpush1.bf16.msra.mxu0 0
  %54 = vmatprep.subr.bf16.mxu0 0
  %55 = vmatpush1.bf16.msra.mxu0 0
  %56 = vmatprep.subr.bf16.mxu0 0
  %57 = vmatpush1.bf16.msra.mxu0 0
  %58 = vmatprep.subr.bf16.mxu0 0
  %59 = vmatpush1.bf16.msra.mxu0 0
  %60 = vmatprep.subr.bf16.mxu0 0
  %61 = vmatpush1.bf16.msra.mxu0 0
  %62 = vmatprep.subr.bf16.mxu0 0
  %63 = vmatpush1.bf16.msra.mxu0 0
  %64 = vmatprep.subr.bf16.mxu0 0
  %65 = vmatpush1.bf16.msra.mxu0 0
  %66 = vmatprep.subr.bf16.mxu0 0
  %67 = vmatpush1.bf16.msra.mxu0 0
  %68 = vmatprep.subr.bf16.mxu0 0
  %69 = vmatpush1.bf16.msra.mxu0 0
  %70 = vmatprep.subr.bf16.mxu0 0
  %71 = vmatpush1.bf16.msra.mxu0 0
  %72 = vmatprep.subr.bf16.mxu0 0
  %73 = vmatpush1.bf16.msra.mxu0 0
  %74 = vmatprep.subr.bf16.mxu0 0
  %75 = vmatpush1.bf16.msra.mxu0 0
  %76 = vmatprep.subr.bf16.mxu0 0
  %77 = vmatpush1.bf16.msra.mxu0 0
  %78 = vmatprep.subr.bf16.mxu0 0
  %79 = vmatpush1.bf16.msra.mxu0 0
  %80 = vmatprep.mubr.bf16.mxu0 0
  %81 = vmatmul.mubr.bf16.gmra.mrb[0].mxu0 %v46
  %v82 = vpop.f32.mrb[0].mxu0
  %v83 = vadd.f32 %v32, %v82
  %v84 = vpop.f32.mrb[0].mxu0
  %v85 = vpop.f32.mrb[0].mxu0
  %v86 = vadd.f32 %v32, %v85
  %v87 = vpop.f32.mrb[0].mxu0
  %88 = vdwg.mxu0
  %v89 = vmax.f32 %v83, 0.0
  %v90 = vmax.f32 %v86, 0.0
  %v91 = vpack.c.bf16 %v90, %v89
  %v92 = vld [vmem:[%s2] sm:$0xf]
  %v93 = vld [vmem:[%s2 + $0x4] sm:$0xf]
  %v94 = vld [vmem:[%s2 + $0x8] sm:$0xf]
  %v95 = vld [vmem:[%s2 + $0xc] sm:$0xf]
  %v96 = vlaneseq
  %v97 = vshrl.u32 %v96, 7
  %v98 = vsub.s32 1, %v97
  %v99 = vrot.slane %v24, %v98
  %v104 = vunpack.c.l.b16 %v92
  %v105 = vunpack.c.l.b16 %v93
  %v106 = vunpack.c.l.b16 %v94
  %v107 = vunpack.c.l.b16 %v95
  %v108 = vpack.c.b16 %v105, %v104
  %v109 = vpack.c.b16 %v107, %v106
  %vm112 = vcmask 261120
  %v114 = vsel %vm112, %v91, 0
  %116 = vmatprep.subr.bf16.mxu0 0
  %117 = vmatpush1.bf16.msra.mxu0 %v108
  %118 = vmatprep.subr.bf16.mxu0 0
  %119 = vmatpush1.bf16.msra.mxu0 %v109
  %120 = vmatprep.subr.bf16.mxu0 0
  %121 = vmatpush1.bf16.msra.mxu0 0
  %122 = vmatprep.subr.bf16.mxu0 0
  %123 = vmatpush1.bf16.msra.mxu0 0
  %124 = vmatprep.subr.bf16.mxu0 0
  %125 = vmatpush1.bf16.msra.mxu0 0
  %126 = vmatprep.subr.bf16.mxu0 0
  %127 = vmatpush1.bf16.msra.mxu0 0
  %128 = vmatprep.subr.bf16.mxu0 0
  %129 = vmatpush1.bf16.msra.mxu0 0
  %130 = vmatprep.subr.bf16.mxu0 0
  %131 = vmatpush1.bf16.msra.mxu0 0
  %132 = vmatprep.subr.bf16.mxu0 0
  %133 = vmatpush1.bf16.msra.mxu0 0
  %134 = vmatprep.subr.bf16.mxu0 0
  %135 = vmatpush1.bf16.msra.mxu0 0
  %136 = vmatprep.subr.bf16.mxu0 0
  %137 = vmatpush1.bf16.msra.mxu0 0
  %138 = vmatprep.subr.bf16.mxu0 0
  %139 = vmatpush1.bf16.msra.mxu0 0
  %140 = vmatprep.subr.bf16.mxu0 0
  %141 = vmatpush1.bf16.msra.mxu0 0
  %142 = vmatprep.subr.bf16.mxu0 0
  %143 = vmatpush1.bf16.msra.mxu0 0
  %144 = vmatprep.subr.bf16.mxu0 0
  %145 = vmatpush1.bf16.msra.mxu0 0
  %146 = vmatprep.subr.bf16.mxu0 0
  %147 = vmatpush1.bf16.msra.mxu0 0
  %148 = vmatprep.mubr.bf16.mxu0 0
  %149 = vmatmul.mubr.bf16.gmra.mrb[0].mxu0 %v114
  %v150 = vpop.f32.mrb[0].mxu0
  %v151 = vadd.f32 %v99, %v150
  %v152 = vpop.f32.mrb[0].mxu0
  %v153 = vpop.f32.mrb[0].mxu0
  %v154 = vadd.f32 %v99, %v153
  %v155 = vpop.f32.mrb[0].mxu0
  %156 = vdwg.mxu0
  %v157 = vmax.f32 %v151, 0.0
  %v158 = vmax.f32 %v154, 0.0
  %v159 = vpack.c.bf16 %v158, %v157
  %v160 = vld [vmem:[%s3] sm:$0xf]
  %v161 = vld [vmem:[%s3 + $0x4] sm:$0xf]
  %v162 = vld [vmem:[%s3 + $0x8] sm:$0xf]
  %v163 = vld [vmem:[%s3 + $0xc] sm:$0xf]
  %v164 = vlaneseq
  %v165 = vshrl.u32 %v164, 7
  %v166 = vsub.s32 2, %v165
  %v167 = vrot.slane %v24, %v166
  %v172 = vunpack.c.l.b16 %v160
  %v173 = vunpack.c.l.b16 %v161
  %v174 = vunpack.c.l.b16 %v162
  %v175 = vunpack.c.l.b16 %v163
  %v176 = vpack.c.b16 %v173, %v172
  %v177 = vpack.c.b16 %v175, %v174
  %v181 = vsel %vm112, %v159, 0
  %183 = vmatprep.subr.bf16.mxu0 0
  %184 = vmatpush1.bf16.msra.mxu0 %v176
  %185 = vmatprep.subr.bf16.mxu0 0
  %186 = vmatpush1.bf16.msra.mxu0 %v177
  %187 = vmatprep.subr.bf16.mxu0 0
  %188 = vmatpush1.bf16.msra.mxu0 0
  %189 = vmatprep.subr.bf16.mxu0 0
  %190 = vmatpush1.bf16.msra.mxu0 0
  %191 = vmatprep.subr.bf16.mxu0 0
  %192 = vmatpush1.bf16.msra.mxu0 0
  %193 = vmatprep.subr.bf16.mxu0 0
  %194 = vmatpush1.bf16.msra.mxu0 0
  %195 = vmatprep.subr.bf16.mxu0 0
  %196 = vmatpush1.bf16.msra.mxu0 0
  %197 = vmatprep.subr.bf16.mxu0 0
  %198 = vmatpush1.bf16.msra.mxu0 0
  %199 = vmatprep.subr.bf16.mxu0 0
  %200 = vmatpush1.bf16.msra.mxu0 0
  %201 = vmatprep.subr.bf16.mxu0 0
  %202 = vmatpush1.bf16.msra.mxu0 0
  %203 = vmatprep.subr.bf16.mxu0 0
  %204 = vmatpush1.bf16.msra.mxu0 0
  %205 = vmatprep.subr.bf16.mxu0 0
  %206 = vmatpush1.bf16.msra.mxu0 0
  %207 = vmatprep.subr.bf16.mxu0 0
  %208 = vmatpush1.bf16.msra.mxu0 0
  %209 = vmatprep.subr.bf16.mxu0 0
  %210 = vmatpush1.bf16.msra.mxu0 0
  %211 = vmatprep.subr.bf16.mxu0 0
  %212 = vmatpush1.bf16.msra.mxu0 0
  %213 = vmatprep.subr.bf16.mxu0 0
  %214 = vmatpush1.bf16.msra.mxu0 0
  %215 = vmatprep.mubr.bf16.mxu0 0
  %216 = vmatmul.mubr.bf16.gmra.mrb[0].mxu0 %v181
  %v217 = vpop.f32.mrb[0].mxu0
  %v218 = vadd.f32 %v167, %v217
  %v219 = vpop.f32.mrb[0].mxu0
  %v220 = vpop.f32.mrb[0].mxu0
  %v221 = vadd.f32 %v167, %v220
  %v222 = vpop.f32.mrb[0].mxu0
  %223 = vdwg.mxu0
  %v224 = vmul.f32 %v218, %v218
  %v225 = vmul.f32 %v221, %v221
  %v226 = vmul.f32 %v218, %v224
  %v227 = vmul.f32 %v221, %v225
  %v228 = vmul.f32 %v226, 0.044715
  %v229 = vmul.f32 %v227, 0.044715
  %v230 = vadd.f32 %v218, %v228
  %v231 = vadd.f32 %v221, %v229
  %v232 = vmul.f32 %v230, 0.7978846
  %v233 = vmul.f32 %v231, 0.7978846
  %v234 = vtanh.pop %v232
  %v235 = vtanh.pop %v233
  %v236 = vadd.f32 %v234, 1.0
  %v237 = vadd.f32 %v235, 1.0
  %v238 = vmul.f32 %v236, 0.5
  %v239 = vmul.f32 %v237, 0.5
  %v240 = vmul.f32 %v218, %v238
  %v241 = vmul.f32 %v221, %v239
  %v242 = vpack.c.bf16 %v241, %v240
  %s243 = scalar_lea.vmem %s3, 16
  %v244 = vld [vmem:[%s243] sm:$0xf]
  %v245 = vld [vmem:[%s243 + $0x4] sm:$0xf]
  %v246 = vld [vmem:[%s243 + $0x8] sm:$0xf]
  %v247 = vld [vmem:[%s243 + $0xc] sm:$0xf]
  %v248 = vlaneseq
  %v249 = vshrl.u32 %v248, 7
  %v250 = vsub.s32 3, %v249
  %v251 = vrot.slane %v24, %v250
  %v256 = vunpack.c.l.b16 %v244
  %v257 = vunpack.c.l.b16 %v245
  %v258 = vunpack.c.l.b16 %v246
  %v259 = vunpack.c.l.b16 %v247
  %v260 = vpack.c.b16 %v257, %v256
  %v261 = vpack.c.b16 %v259, %v258
  %v265 = vsel %vm112, %v242, 0
  %267 = vmatprep.subr.bf16.mxu0 0
  %268 = vmatpush1.bf16.msra.mxu0 %v260
  %269 = vmatprep.subr.bf16.mxu0 0
  %270 = vmatpush1.bf16.msra.mxu0 %v261
  %271 = vmatprep.subr.bf16.mxu0 0
  %272 = vmatpush1.bf16.msra.mxu0 0
  %273 = vmatprep.subr.bf16.mxu0 0
  %274 = vmatpush1.bf16.msra.mxu0 0
  %275 = vmatprep.subr.bf16.mxu0 0
  %276 = vmatpush1.bf16.msra.mxu0 0
  %277 = vmatprep.subr.bf16.mxu0 0
  %278 = vmatpush1.bf16.msra.mxu0 0
  %279 = vmatprep.subr.bf16.mxu0 0
  %280 = vmatpush1.bf16.msra.mxu0 0
  %281 = vmatprep.subr.bf16.mxu0 0
  %282 = vmatpush1.bf16.msra.mxu0 0
  %283 = vmatprep.subr.bf16.mxu0 0
  %284 = vmatpush1.bf16.msra.mxu0 0
  %285 = vmatprep.subr.bf16.mxu0 0
  %286 = vmatpush1.bf16.msra.mxu0 0
  %287 = vmatprep.subr.bf16.mxu0 0
  %288 = vmatpush1.bf16.msra.mxu0 0
  %289 = vmatprep.subr.bf16.mxu0 0
  %290 = vmatpush1.bf16.msra.mxu0 0
  %291 = vmatprep.subr.bf16.mxu0 0
  %292 = vmatpush1.bf16.msra.mxu0 0
  %293 = vmatprep.subr.bf16.mxu0 0
  %294 = vmatpush1.bf16.msra.mxu0 0
  %295 = vmatprep.subr.bf16.mxu0 0
  %296 = vmatpush1.bf16.msra.mxu0 0
  %297 = vmatprep.subr.bf16.mxu0 0
  %298 = vmatpush1.bf16.msra.mxu0 0
  %299 = vmatprep.mubr.bf16.mxu0 0
  %300 = vmatmul.mubr.bf16.gmra.mrb[0].mxu0 %v265
  %v301 = vpop.f32.mrb[0].mxu0
  %v302 = vadd.f32 %v251, %v301
  %v303 = vpop.f32.mrb[0].mxu0
  %v304 = vpop.f32.mrb[0].mxu0
  %v305 = vadd.f32 %v251, %v304
  %v306 = vpop.f32.mrb[0].mxu0
  %307 = vdwg.mxu0
  %v308 = vmul.f32 %v302, %v302
  %v309 = vmul.f32 %v305, %v305
  %v310 = vmul.f32 %v302, %v308
  %v311 = vmul.f32 %v305, %v309
  %v312 = vmul.f32 %v310, 0.044715
  %v313 = vmul.f32 %v311, 0.044715
  %v314 = vadd.f32 %v302, %v312
  %v315 = vadd.f32 %v305, %v313
  %v316 = vmul.f32 %v314, 0.7978846
  %v317 = vmul.f32 %v315, 0.7978846
  %v318 = vtanh.pop %v316
  %v319 = vtanh.pop %v317
  %v320 = vadd.f32 %v318, 1.0
  %v321 = vadd.f32 %v319, 1.0
  %v322 = vmul.f32 %v320, 0.5
  %v323 = vmul.f32 %v321, 0.5
  %v324 = vmul.f32 %v302, %v322
  %v325 = vmul.f32 %v305, %v323
  %v326 = vpack.c.bf16 %v325, %v324
  %s327 = scalar_lea.vmem %s3, 32
  %v328 = vld [vmem:[%s327] sm:$0xf]
  %v329 = vld [vmem:[%s327 + $0x4] sm:$0xf]
  %v330 = vld [vmem:[%s327 + $0x8] sm:$0xf]
  %v331 = vld [vmem:[%s327 + $0xc] sm:$0xf]
  %v332 = vlaneseq
  %v333 = vshrl.u32 %v332, 7
  %v334 = vsub.s32 4, %v333
  %v335 = vrot.slane %v24, %v334
  %v340 = vunpack.c.l.b16 %v328
  %v341 = vunpack.c.l.b16 %v329
  %v342 = vunpack.c.l.b16 %v330
  %v343 = vunpack.c.l.b16 %v331
  %v344 = vpack.c.b16 %v341, %v340
  %v345 = vpack.c.b16 %v343, %v342
  %v349 = vsel %vm112, %v326, 0
  %351 = vmatprep.subr.bf16.mxu0 0
  %352 = vmatpush1.bf16.msra.mxu0 %v344
  %353 = vmatprep.subr.bf16.mxu0 0
  %354 = vmatpush1.bf16.msra.mxu0 %v345
  %355 = vmatprep.subr.bf16.mxu0 0
  %356 = vmatpush1.bf16.msra.mxu0 0
  %357 = vmatprep.subr.bf16.mxu0 0
  %358 = vmatpush1.bf16.msra.mxu0 0
  %359 = vmatprep.subr.bf16.mxu0 0
  %360 = vmatpush1.bf16.msra.mxu0 0
  %361 = vmatprep.subr.bf16.mxu0 0
  %362 = vmatpush1.bf16.msra.mxu0 0
  %363 = vmatprep.subr.bf16.mxu0 0
  %364 = vmatpush1.bf16.msra.mxu0 0
  %365 = vmatprep.subr.bf16.mxu0 0
  %366 = vmatpush1.bf16.msra.mxu0 0
  %367 = vmatprep.subr.bf16.mxu0 0
  %368 = vmatpush1.bf16.msra.mxu0 0
  %369 = vmatprep.subr.bf16.mxu0 0
  %370 = vmatpush1.bf16.msra.mxu0 0
  %371 = vmatprep.subr.bf16.mxu0 0
  %372 = vmatpush1.bf16.msra.mxu0 0
  %373 = vmatprep.subr.bf16.mxu0 0
  %374 = vmatpush1.bf16.msra.mxu0 0
  %375 = vmatprep.subr.bf16.mxu0 0
  %376 = vmatpush1.bf16.msra.mxu0 0
  %377 = vmatprep.subr.bf16.mxu0 0
  %378 = vmatpush1.bf16.msra.mxu0 0
  %379 = vmatprep.subr.bf16.mxu0 0
  %380 = vmatpush1.bf16.msra.mxu0 0
  %381 = vmatprep.subr.bf16.mxu0 0
  %382 = vmatpush1.bf16.msra.mxu0 0
  %383 = vmatprep.mubr.bf16.mxu0 0
  %384 = vmatmul.mubr.bf16.gmra.mrb[0].mxu0 %v349
  %v385 = vpop.f32.mrb[0].mxu0
  %v386 = vadd.f32 %v335, %v385
  %v387 = vpop.f32.mrb[0].mxu0
  %v388 = vpop.f32.mrb[0].mxu0
  %v389 = vadd.f32 %v335, %v388
  %v390 = vpop.f32.mrb[0].mxu0
  %391 = vdwg.mxu0
  %v392 = vmul.f32 %v386, %v386
  %v393 = vmul.f32 %v389, %v389
  %v394 = vmul.f32 %v386, %v392
  %v395 = vmul.f32 %v389, %v393
  %v396 = vmul.f32 %v394, 0.044715
  %v397 = vmul.f32 %v395, 0.044715
  %v398 = vadd.f32 %v386, %v396
  %v399 = vadd.f32 %v389, %v397
  %v400 = vmul.f32 %v398, 0.7978846
  %v401 = vmul.f32 %v399, 0.7978846
  %v402 = vtanh.pop %v400
  %v403 = vtanh.pop %v401
  %v404 = vadd.f32 %v402, 1.0
  %v405 = vadd.f32 %v403, 1.0
  %v406 = vmul.f32 %v404, 0.5
  %v407 = vmul.f32 %v405, 0.5
  %v408 = vmul.f32 %v386, %v406
  %v409 = vmul.f32 %v389, %v407
  %v410 = vpack.c.bf16 %v409, %v408
  %v411 = vld [vmem:[%s4] sm:$0xf]
  %v412 = vld [vmem:[%s4 + $0x4] sm:$0xf]
  %v413 = vld [vmem:[%s4 + $0x8] sm:$0xf]
  %v414 = vld [vmem:[%s4 + $0xc] sm:$0xf]
  %v415 = vlaneseq
  %v416 = vshrl.u32 %v415, 7
  %v417 = vsub.s32 5, %v416
  %v418 = vrot.slane %v24, %v417
  %v423 = vunpack.c.l.b16 %v411
  %v424 = vunpack.c.l.b16 %v412
  %v425 = vunpack.c.l.b16 %v413
  %v426 = vunpack.c.l.b16 %v414
  %v427 = vpack.c.b16 %v424, %v423
  %v428 = vpack.c.b16 %v426, %v425
  %v432 = vsel %vm112, %v410, 0
  %434 = vmatprep.subr.bf16.mxu0 0
  %435 = vmatpush1.bf16.msra.mxu0 %v427
  %436 = vmatprep.subr.bf16.mxu0 0
  %437 = vmatpush1.bf16.msra.mxu0 %v428
  %438 = vmatprep.subr.bf16.mxu0 0
  %439 = vmatpush1.bf16.msra.mxu0 0
  %440 = vmatprep.subr.bf16.mxu0 0
  %441 = vmatpush1.bf16.msra.mxu0 0
  %442 = vmatprep.subr.bf16.mxu0 0
  %443 = vmatpush1.bf16.msra.mxu0 0
  %444 = vmatprep.subr.bf16.mxu0 0
  %445 = vmatpush1.bf16.msra.mxu0 0
  %446 = vmatprep.subr.bf16.mxu0 0
  %447 = vmatpush1.bf16.msra.mxu0 0
  %448 = vmatprep.subr.bf16.mxu0 0
  %449 = vmatpush1.bf16.msra.mxu0 0
  %450 = vmatprep.subr.bf16.mxu0 0
  %451 = vmatpush1.bf16.msra.mxu0 0
  %452 = vmatprep.subr.bf16.mxu0 0
  %453 = vmatpush1.bf16.msra.mxu0 0
  %454 = vmatprep.subr.bf16.mxu0 0
  %455 = vmatpush1.bf16.msra.mxu0 0
  %456 = vmatprep.subr.bf16.mxu0 0
  %457 = vmatpush1.bf16.msra.mxu0 0
  %458 = vmatprep.subr.bf16.mxu0 0
  %459 = vmatpush1.bf16.msra.mxu0 0
  %460 = vmatprep.subr.bf16.mxu0 0
  %461 = vmatpush1.bf16.msra.mxu0 0
  %462 = vmatprep.subr.bf16.mxu0 0
  %463 = vmatpush1.bf16.msra.mxu0 0
  %464 = vmatprep.subr.bf16.mxu0 0
  %465 = vmatpush1.bf16.msra.mxu0 0
  %466 = vmatprep.mubr.bf16.mxu0 0
  %467 = vmatmul.mubr.bf16.gmra.mrb[0].mxu0 %v432
  %v468 = vpop.f32.mrb[0].mxu0
  %v469 = vadd.f32 %v418, %v468
  %v470 = vpop.f32.mrb[0].mxu0
  %v471 = vpop.f32.mrb[0].mxu0
  %v472 = vadd.f32 %v418, %v471
  %v473 = vpop.f32.mrb[0].mxu0
  %474 = vdwg.mxu0
  %vm475 = vcmask 64512
  %v476 = vsel %vm475, %v469, -inf
  %477 = vmax.xlane.f32.xlu0 %v476
  %v478 = vpop.xlane.xlu0 %477
  %v479 = vsel %vm475, %v472, -inf
  %480 = vmax.xlane.f32.xlu0 %v479
  %v481 = vpop.xlane.xlu0 %480
  %v482 = vsub.f32 %v469, %v478
  %v483 = vsub.f32 %v472, %v481
  %v484 = vmul.f32 %v482, 1.442695
  %v485 = vpow.pop %v484
  %v486 = vmul.f32 %v483, 1.442695
  %v487 = vpow.pop %v486
  %v488 = vsel %vm475, %v485, 0.0
  %489 = vadd.xlane.f32.xlu0 %v488
  %v490 = vpop.xlane.xlu0 %489
  %v491 = vsel %vm475, %v487, 0.0
  %492 = vadd.xlane.f32.xlu0 %v491
  %v493 = vpop.xlane.xlu0 %492
  %v494 = vrcp.pop %v490
  %v495 = vmul.f32 %v485, %v494
  %v496 = vrcp.pop %v493
  %v497 = vmul.f32 %v487, %v496
  %v498 = vpack.c.bf16 %v472, %v469
  %v500 = vunpack.c.l.b16 %v498
  %v501 = vunpack.c.h.b16 %v498
  %v502 = vpack.c.b16 %v500, %v500
  %v503 = vpack.c.b16 %v501, %v501
  %504 = vrot.lane.b32.xlu0 %v502, 120
  %v505 = vpop.permute.xlu0 %504
  %506 = vrot.lane.b32.xlu0 %v503, 120
  %v507 = vpop.permute.xlu0 %506
  %vm510 = vcmask 11264
  %511 = vst.msk [vmem:[%s6] sm:$0xf] %vm510, %v505
  %512 = vst.msk [vmem:[%s6 + $0x4] sm:$0xf] %vm510, %v507
  %v513 = vpack.c.bf16 %v497, %v495
  %v515 = vunpack.c.l.b16 %v513
  %v516 = vunpack.c.h.b16 %v513
  %v517 = vpack.c.b16 %v515, %v515
  %v518 = vpack.c.b16 %v516, %v516
  %519 = vrot.lane.b32.xlu0 %v517, 2
  %v520 = vpop.permute.xlu0 %519
  %521 = vrot.lane.b32.xlu0 %v518, 2
  %v522 = vpop.permute.xlu0 %521
  %vm525 = vcmask 76816
  %526 = vst.msk [vmem:[%s6] sm:$0xf] %vm525, %v520
  %527 = vst.msk [vmem:[%s6 + $0x4] sm:$0xf] %vm525, %v522
  %v529 = vunpack.c.l.b16 %v159
  %v530 = vunpack.c.h.b16 %v159
  %v531 = vpack.c.b16 %v529, %v529
  %v532 = vpack.c.b16 %v530, %v530
  %533 = vrot.lane.b32.xlu0 %v531, 10
  %v534 = vpop.permute.xlu0 %533
  %535 = vrot.lane.b32.xlu0 %v532, 10
  %v536 = vpop.permute.xlu0 %535
  %vm539 = vcmask 339024
  %540 = vst.msk [vmem:[%s6] sm:$0xf] %vm539, %v534
  %541 = vst.msk [vmem:[%s6 + $0x4] sm:$0xf] %vm539, %v536
  // Predicated region
  $region26: #{_ptarl_forward_impl.1} parent=0 // pred_check
    _
  $region27: #{_ptarl_forward_impl.1} parent=0 // pred_check_branch
    %543 = sbr.rel (0) target = $region29
  $region28: #{_ptarl_forward_impl.1} parent=0 // pred_region
    _
  $region29: #{_ptarl_forward_impl.1} parent=0 // pred_fallthru
    _
  // Predicated region
  $region30: #{_ptarl_forward_impl.1} parent=0 // pred_check
    _
  $region31: #{_ptarl_forward_impl.1} parent=0 // pred_check_branch
    %545 = sbr.rel (0) target = $region33
  $region32: #{_ptarl_forward_impl.1} parent=0 // pred_region
    _
  $region33: #{_ptarl_forward_impl.1} parent=0 // pred_fallthru
    _

</llo_original>
